<compile_context>
chip_gen: v7x
topology: tpu7x:2x2x1
jax: 0.10.0
libtpu: 0.0.40
codegen_flags: <defaults>
</compile_context>

<pallas_src>
import functools

import jax
import jax.numpy as jnp
from jax import lax
from jax.experimental import pallas as pl
from jax.experimental.pallas import tpu as pltpu

EPS = 1e-5        # nn.BatchNorm2d default eps
LANES = 128       # lane-dense slab width
D_OFF = 64        # lane offset of the downsample / conv3 / final-output channels inside the slab

_VMEM = pl.BlockSpec(memory_space=pltpu.MemorySpace.VMEM)   # whole array resident in VMEM


def _bn_scale_shift(y, gb):
    """Training-mode (batch-stat) BN folded to y*scale + shift.  y: (rows, 128) f32."""
    mean = jnp.mean(y, axis=0, keepdims=True)
    var = jnp.mean(jnp.square(y - mean), axis=0, keepdims=True)   # two-pass, biased (PyTorch fwd)
    scale = gb[0:1, :] * lax.rsqrt(var + EPS)                     # gamma zero-padded -> pad lanes 0
    shift = gb[1:2, :] - mean * scale
    return scale, shift


# ---------------------------------------------------------------------------
# Kernel 1: fused conv1 + downsample matmul; BN1 + ReLU applied to the conv1 lanes only.
# ---------------------------------------------------------------------------
def _conv1_down_kernel(a_ref, w_ref, gb1_ref, o_ref):
    # (M1, Cin) @ (Cin, 128): lanes [0,c1) = conv1 output, lanes [D_OFF,D_OFF+c3) = downsample conv.
    y = jnp.dot(a_ref[...], w_ref[...], preferred_element_type=jnp.float32)
    s1, t1 = _bn_scale_shift(y, gb1_ref[...])
    y_bn = jnp.maximum(y * s1 + t1, 0.0)                               # BN1 + ReLU (conv1 lanes)
    lane = lax.broadcasted_iota(jnp.int32, (1, LANES), 1)
    o_ref[...] = jnp.where(lane < D_OFF, y_bn, y).astype(o_ref.dtype)  # downsample lanes stay raw


# ---------------------------------------------------------------------------
# Kernel 2: in-kernel 3x3/stride-2 patch build -> conv2 (+BN2+ReLU) -> conv3, downsample BN,
#           residual add, final ReLU.  Single grid step; BN stats computed on in-VMEM tiles.
# ---------------------------------------------------------------------------
def _tail_kernel(ph00, ph01, ph10, ph11, w2_ref, gb2_ref, w3_ref, gb3_ref, gbd_ref,
                 o_ref, *, n_img, hh, ho, wo):
    phases = ((ph00, ph01), (ph10, ph11))
    y2_parts, yd_parts = [], []
    for n in range(n_img):                                    # static unroll over images
        acc = jnp.zeros((ho * wo, LANES), jnp.float32)
        for di in range(3):
            for dj in range(3):
                ph = phases[di % 2][dj % 2]                   # parity phase of the padded y1 slab
                r0 = n * hh + di // 2
                c0 = dj // 2
                a = ph[r0:r0 + ho, c0:c0 + wo, :].reshape(ho * wo, LANES)   # tap operand, bf16
                if di == 1 and dj == 1:
                    # Centre tap == the stride-2 positions: the downsample conv values ride along
                    # in lanes [D_OFF, D_OFF+c3) of this very slice — no extra load needed.
                    yd_parts.append(a.astype(jnp.float32))
                acc = acc + jnp.dot(a, w2_ref[di * 3 + dj],
                                    preferred_element_type=jnp.float32)
        y2_parts.append(acc)
    y2 = y2_parts[0] if n_img == 1 else jnp.concatenate(y2_parts, axis=0)   # (M3, 128) f32
    yd = yd_parts[0] if n_img == 1 else jnp.concatenate(yd_parts, axis=0)   # (M3, 128) f32

    s2, t2 = _bn_scale_shift(y2, gb2_ref[...])
    y2n = jnp.maximum(y2 * s2 + t2, 0.0).astype(jnp.bfloat16)               # BN2 + ReLU
    y3 = jnp.dot(y2n, w3_ref[...], preferred_element_type=jnp.float32)      # conv3 -> lanes D_OFF+

    s3, t3 = _bn_scale_shift(y3, gb3_ref[...])
    sd, td = _bn_scale_shift(yd, gbd_ref[...])
    o_ref[...] = jnp.maximum((y3 * s3 + t3) + (yd * sd + td), 0.0)          # residual add + ReLU


# ---------------------------------------------------------------------------
# Parameter packing (lane-dense, zero-padded so padded lanes stay exactly zero through BN/ReLU)
# ---------------------------------------------------------------------------
def _pack_gb(gamma, beta, off):
    gb = jnp.zeros((2, LANES), jnp.float32)
    gb = gb.at[0, off:off + gamma.shape[0]].set(gamma)
    gb = gb.at[1, off:off + beta.shape[0]].set(beta)
    return gb


def _conv1_down_weight(w1, wd, cinp):
    cin = w1.shape[1]
    m = jnp.zeros((cinp, LANES), jnp.float32)
    m = m.at[:cin, :w1.shape[0]].set(w1[:, :, 0, 0].T)                   # conv1 -> lanes [0, c1)
    m = m.at[:cin, D_OFF:D_OFF + wd.shape[0]].set(wd[:, :, 0, 0].T)      # downsample -> lanes D_OFF+
    return m.astype(jnp.bfloat16)


def _conv2_weight(w2):
    c2, c1, kh, kw = w2.shape
    w = jnp.transpose(w2, (2, 3, 1, 0)).reshape(kh * kw, c1, c2)
    m = jnp.zeros((kh * kw, LANES, LANES), jnp.float32)                  # tap-major (9, 128, 128)
    m = m.at[:, :c1, :c2].set(w)
    return m.astype(jnp.bfloat16)


def _conv3_weight(w3):
    c3, c2 = w3.shape[:2]
    m = jnp.zeros((LANES, LANES), jnp.float32)
    m = m.at[:c2, D_OFF:D_OFF + c3].set(w3[:, :, 0, 0].T)                # conv3 -> lanes D_OFF+
    return m.astype(jnp.bfloat16)


# ---------------------------------------------------------------------------
# Bottleneck forward
# ---------------------------------------------------------------------------
def bottleneck_forward(x_nchw, params, cfg):
    n, cin, h, w = x_nchw.shape
    c1 = params["w1"].shape[0]
    c2 = params["w2"].shape[0]
    c3 = params["w3"].shape[0]

    assert tuple(cfg["conv1"]) == (1, 1, 0) and tuple(cfg["conv3"]) == (1, 1, 0)
    assert tuple(cfg["conv2"]) == (3, 2, 1) and tuple(cfg["down"]) == (1, 2, 0)
    assert h % 2 == 0 and w % 2 == 0
    assert c1 <= D_OFF and c3 <= LANES - D_OFF and c2 <= LANES and params["wd"].shape[0] == c3

    # x -> NHWC, lane-dense matmul operand (read ONCE for both conv1 and the downsample conv).
    x = jnp.transpose(x_nchw, (0, 2, 3, 1))
    cinp = ((cin + 7) // 8) * 8
    a1 = x.reshape(n * h * w, cin)
    if cinp != cin:
        a1 = jnp.pad(a1, ((0, 0), (0, cinp - cin)))
    a1 = a1.astype(jnp.bfloat16)

    w1d = _conv1_down_weight(params["w1"], params["wd"], cinp)
    gb1 = _pack_gb(params["g1"], params["beta1"], 0)

    y1 = pl.pallas_call(
        _conv1_down_kernel,
        out_shape=jax.ShapeDtypeStruct((n * h * w, LANES), jnp.bfloat16),
        in_specs=[_VMEM, _VMEM, _VMEM],
        out_specs=_VMEM,
    )(a1, w1d, gb1)

    # Zero-pad spatially (conv2 padding=1) and split into four (row,col) parity phases so the tail
    # kernel can build the stride-2 3x3 patches with plain contiguous slices (no HBM im2col blow-up).
    hh, wh = (h + 2) // 2, (w + 2) // 2
    ho, wo = h // 2, w // 2
    y1p = jnp.pad(y1.reshape(n, h, w, LANES), ((0, 0), (1, 1), (1, 1), (0, 0)))
    phases = tuple(
        y1p[:, pi::2, pj::2, :].reshape(n * hh, wh, LANES)
        for pi in range(2) for pj in range(2))

    w2m = _conv2_weight(params["w2"])
    w3m = _conv3_weight(params["w3"])
    gb2 = _pack_gb(params["g2"], params["beta2"], 0)
    gb3 = _pack_gb(params["g3"], params["beta3"], D_OFF)
    gbd = _pack_gb(params["gd"], params["betad"], D_OFF)

    out_slab = pl.pallas_call(
        functools.partial(_tail_kernel, n_img=n, hh=hh, ho=ho, wo=wo),
        out_shape=jax.ShapeDtypeStruct((n * ho * wo, LANES), jnp.float32),
        in_specs=[_VMEM] * 9,
        out_specs=_VMEM,
    )(*phases, w2m, gb2, w3m, gb3, gbd)

    out = out_slab[:, D_OFF:D_OFF + c3].reshape(n, ho, wo, c3)
    return jnp.transpose(out, (0, 3, 1, 2))     # back to NCHW like the PyTorch module


# ---------------------------------------------------------------------------
# Reference (lax.conv with the same bf16 operand rounding, f32 accumulation & batch-stat BN)
# ---------------------------------------------------------------------------
def _ref_conv(x_nhwc, w_oihw, b, stride, pad):
    w_hwio = jnp.transpose(w_oihw, (2, 3, 1, 0)).astype(jnp.bfloat16)
    y = lax.conv_general_dilated(
        x_nhwc.astype(jnp.bfloat16), w_hwio, window_strides=(stride, stride),
        padding=[(pad, pad), (pad, pad)],
        dimension_numbers=("NHWC", "HWIO", "NHWC"),
        preferred_element_type=jnp.float32)
    return y + b                      # bias kept here; it cancels under batch-stat BN


def _ref_bn(y, g, beta):
    mean = jnp.mean(y, axis=(0, 1, 2), keepdims=True)
    var = jnp.mean(jnp.square(y - mean), axis=(0, 1, 2), keepdims=True)
    return (y - mean) * lax.rsqrt(var + EPS) * g + beta


def reference_forward(x_nchw, params, cfg):
    x = jnp.transpose(x_nchw, (0, 2, 3, 1)).astype(jnp.float32)
    y = _ref_conv(x, params["w1"], params["b1"], cfg["conv1"][1], cfg["conv1"][2])
    y = jnp.maximum(_ref_bn(y, params["g1"], params["beta1"]), 0.0)
    y = _ref_conv(y, params["w2"], params["b2"], cfg["conv2"][1], cfg["conv2"][2])
    y = jnp.maximum(_ref_bn(y, params["g2"], params["beta2"]), 0.0)
    y = _ref_conv(y, params["w3"], params["b3"], cfg["conv3"][1], cfg["conv3"][2])
    out1 = _ref_bn(y, params["g3"], params["beta3"])
    z = _ref_conv(x, params["wd"], params["bd"], cfg["down"][1], cfg["down"][2])
    out2 = _ref_bn(z, params["gd"], params["betad"])
    out = jnp.maximum(out1 + out2, 0.0)
    return jnp.transpose(out, (0, 3, 1, 2))


# ---------------------------------------------------------------------------
# Main
# ---------------------------------------------------------------------------
if __name__ == "__main__":
    # (kernel, stride, padding) per conv — same semantics as the module constructor args.
    cfg = {
        "conv1": (1, 1, 0),   # 1x1            Cin=8 -> 16
        "conv2": (3, 2, 1),   # 3x3 stride 2   16    -> 16
        "conv3": (1, 1, 0),   # 1x1            16    -> 32
        "down":  (1, 2, 0),   # 1x1 stride 2   Cin=8 -> 32
    }
    cin, c1, c2, c3 = 8, 16, 16, 32
    N, H, W = 2, 16, 16

    ks = jax.random.split(jax.random.PRNGKey(0), 17)

    def conv_w(k, cout, cin_, ksz):
        return 0.1 * jax.random.normal(k, (cout, cin_, ksz, ksz), jnp.float32)

    params = {
        "w1": conv_w(ks[0], c1, cin, 1), "b1": 0.05 * jax.random.normal(ks[1], (c1,), jnp.float32),
        "g1": 1.0 + 0.1 * jax.random.normal(ks[2], (c1,), jnp.float32),
        "beta1": 0.1 * jax.random.normal(ks[3], (c1,), jnp.float32),

        "w2": conv_w(ks[4], c2, c1, 3), "b2": 0.05 * jax.random.normal(ks[5], (c2,), jnp.float32),
        "g2": 1.0 + 0.1 * jax.random.normal(ks[6], (c2,), jnp.float32),
        "beta2": 0.1 * jax.random.normal(ks[7], (c2,), jnp.float32),

        "w3": conv_w(ks[8], c3, c2, 1), "b3": 0.05 * jax.random.normal(ks[9], (c3,), jnp.float32),
        "g3": 1.0 + 0.1 * jax.random.normal(ks[10], (c3,), jnp.float32),
        "beta3": 0.1 * jax.random.normal(ks[11], (c3,), jnp.float32),

        "wd": conv_w(ks[12], c3, cin, 1), "bd": 0.05 * jax.random.normal(ks[13], (c3,), jnp.float32),
        "gd": 1.0 + 0.1 * jax.random.normal(ks[14], (c3,), jnp.float32),
        "betad": 0.1 * jax.random.normal(ks[15], (c3,), jnp.float32),
    }

    x = jax.random.normal(ks[16], (N, cin, H, W), jnp.float32)   # NCHW like PyTorch

    out = jax.block_until_ready(bottleneck_forward(x, params, cfg))
    ref = jax.block_until_ready(reference_forward(x, params, cfg))

    assert out.shape == (N, c3, H // 2, W // 2), out.shape
    # bf16 MXU operands + bf16 cross-kernel slab (downsample values included) -> loose-ish tolerance.
    err = float(jnp.max(jnp.abs(out - ref)))
    assert jnp.allclose(out, ref, atol=2e-2, rtol=2e-2), err

    print("KERNEL_OK")
</pallas_src>

<mosaic_0001>
module attributes {stable_mosaic.version = 11 : i64} {
  func.func @_conv1_down_kernel(%arg0: memref<512x8xbf16, #tpu.memory_space<vmem>>, %arg1: memref<8x128xbf16, #tpu.memory_space<vmem>>, %arg2: memref<2x128xf32, #tpu.memory_space<vmem>>, %arg3: memref<512x128xbf16, #tpu.memory_space<vmem>>) attributes {dimension_semantics = [], scalar_prefetch = 0 : i64, scratch_operands = 0 : i64, tpu.core_type = #tpu.core_type<tc>} {
    %c0 = arith.constant 0 : index
    %c0_0 = arith.constant 0 : index
    %0 = vector.load %arg0[%c0, %c0_0] : memref<512x8xbf16, #tpu.memory_space<vmem>>, vector<512x8xbf16>
    %c0_1 = arith.constant 0 : index
    %c0_2 = arith.constant 0 : index
    %1 = vector.load %arg1[%c0_1, %c0_2] : memref<8x128xbf16, #tpu.memory_space<vmem>>, vector<8x128xbf16>
    %cst = arith.constant dense<0.000000e+00> : vector<512x128xf32>
    %2 = tpu.matmul %0, %1, %cst {dimension_numbers = #tpu.dot_dimension_numbers<[1], [0], [0], [1], [0, 0, 1, 1], [], []>} : vector<512x8xbf16>, vector<8x128xbf16>, vector<512x128xf32> -> vector<512x128xf32>
    %c0_3 = arith.constant 0 : index
    %c0_4 = arith.constant 0 : index
    %3 = vector.load %arg2[%c0_3, %c0_4] : memref<2x128xf32, #tpu.memory_space<vmem>>, vector<2x128xf32>
    %cst_5 = arith.constant dense<0.000000e+00> : vector<128xf32>
    %4 = vector.multi_reduction <add>, %2, %cst_5 [0] : vector<512x128xf32> to vector<128xf32>
    %5 = vector.shape_cast %4 : vector<128xf32> to vector<1x128xf32>
    %cst_6 = arith.constant 5.120000e+02 : f32
    %6 = vector.broadcast %cst_6 : f32 to vector<1x128xf32>
    %7 = arith.divf %5, %6 : vector<1x128xf32>
    %8 = vector.broadcast %7 : vector<1x128xf32> to vector<512x128xf32>
    %9 = arith.subf %2, %8 : vector<512x128xf32>
    %10 = arith.mulf %9, %9 : vector<512x128xf32>
    %cst_7 = arith.constant dense<0.000000e+00> : vector<128xf32>
    %11 = vector.multi_reduction <add>, %10, %cst_7 [0] : vector<512x128xf32> to vector<128xf32>
    %12 = vector.shape_cast %11 : vector<128xf32> to vector<1x128xf32>
    %cst_8 = arith.constant 5.120000e+02 : f32
    %13 = vector.broadcast %cst_8 : f32 to vector<1x128xf32>
    %14 = arith.divf %12, %13 : vector<1x128xf32>
    %15 = vector.extract_strided_slice %3 {offsets = [0, 0], sizes = [1, 128], strides = [1, 1]} : vector<2x128xf32> to vector<1x128xf32>
    %cst_9 = arith.constant 9.99999974E-6 : f32
    %16 = vector.broadcast %cst_9 : f32 to vector<1x128xf32>
    %17 = arith.addf %14, %16 : vector<1x128xf32>
    %18 = math.rsqrt %17 : vector<1x128xf32>
    %19 = arith.mulf %15, %18 : vector<1x128xf32>
    %20 = vector.extract_strided_slice %3 {offsets = [1, 0], sizes = [1, 128], strides = [1, 1]} : vector<2x128xf32> to vector<1x128xf32>
    %21 = arith.mulf %7, %19 : vector<1x128xf32>
    %22 = arith.subf %20, %21 : vector<1x128xf32>
    %23 = vector.broadcast %19 : vector<1x128xf32> to vector<512x128xf32>
    %24 = arith.mulf %2, %23 : vector<512x128xf32>
    %25 = vector.broadcast %22 : vector<1x128xf32> to vector<512x128xf32>
    %26 = arith.addf %24, %25 : vector<512x128xf32>
    %cst_10 = arith.constant 0.000000e+00 : f32
    %27 = vector.broadcast %cst_10 : f32 to vector<512x128xf32>
    %28 = arith.maximumf %26, %27 : vector<512x128xf32>
    %29 = tpu.iota {dimensions = array<i32: 1>} : vector<1x128xi32>
    %c64_i32 = arith.constant 64 : i32
    %30 = vector.broadcast %c64_i32 : i32 to vector<1x128xi32>
    %31 = arith.cmpi slt, %29, %30 : vector<1x128xi32>
    %32 = vector.shape_cast %31 : vector<1x128xi1> to vector<1x128xi1>
    %33 = vector.broadcast %32 : vector<1x128xi1> to vector<512x128xi1>
    %34 = arith.select %33, %28, %2 : vector<512x128xi1>, vector<512x128xf32>
    %35 = arith.truncf %34 : vector<512x128xf32> to vector<512x128xbf16>
    %c0_11 = arith.constant 0 : index
    %c0_12 = arith.constant 0 : index
    %36 = vector.load %arg3[%c0_11, %c0_12] : memref<512x128xbf16, #tpu.memory_space<vmem>>, vector<512x128xbf16>
    tpu.vector_store %arg3[%c0_11, %c0_12], %35 {strides = array<i32>} : memref<512x128xbf16, #tpu.memory_space<vmem>>, vector<512x128xbf16>,
    return
  }
}

</mosaic_0001>

<llo_original>
// kernel: tpu_custom_call.1
$region0: #{tpu_custom_call.1}
  #allocation0 [shape = 'u32[]', space=smem, size = 0x4, offset = 0x4, fixed_abs, tag = 'smem constant byte address 0x4 - core index']
  #allocation1 [shape = 'u32[144,128]{1,0:T(1,128)}', space=vmem, size = 0x12000, scoped, tag = 'internal scratch']
  %s0 = inlined_call_operand.vmem [shape: bf16[512,8], index: 0, kind: input, shape index: {}]
  %s1 = inlined_call_operand.vmem [shape: bf16[8,128], index: 1, kind: input, shape index: {}]
  %s2 = inlined_call_operand.vmem [shape: f32[2,128], index: 2, kind: input, shape index: {}]
  %s3 = inlined_call_operand.hbm [shape: bf16[512,128], index: 3, kind: output, shape index: {}]
  %s4 = sld [smem:[#allocation0]]
  $region22: #{tpu_custom_call.1} parent=0
    _
  %s6 = ssub.s32 1, %s4
  %s7 = scalar_select 0, %s6, %s4
  $region1: #{tpu_custom_call.1} parent=0
    #allocation2 [shape = 'u8[131072]{0}', space=vmem, size = 0x20000, scoped, tag = 'output window, operand 0, single buffered']
    #allocation3 [shape = 's32[1]{0}', space=sflag, size = 0x4, scoped, tag = 'scoped memory for tpu_custom_call.1']
    %8 = vsyncpa [#allocation3], 0
    // Predicated region
    $region2: #{tpu_custom_call.1} parent=1 // pred_check
      _
    $region3: #{tpu_custom_call.1} parent=1 // pred_check_branch
      %10 = sbr.rel (0) target = $region5
    $region4: #{tpu_custom_call.1} parent=1 // pred_region
      _
    $region5: #{tpu_custom_call.1} parent=1 // pred_fallthru
      _
    // Predicated region
    $region6: #{tpu_custom_call.1} parent=1 // pred_check
      _
    $region7: #{tpu_custom_call.1} parent=1 // pred_check_branch
      %12 = sbr.rel (0) target = $region9
    $region8: #{tpu_custom_call.1} parent=1 // pred_region
      _
    $region9: #{tpu_custom_call.1} parent=1 // pred_fallthru
      _
    // Predicated region
    $region10: #{tpu_custom_call.1} parent=1 // pred_check
      _
    $region11: #{tpu_custom_call.1} parent=1 // pred_check_branch
      %14 = sbr.rel (0) target = $region13
    $region12: #{tpu_custom_call.1} parent=1 // pred_region
      _
    $region13: #{tpu_custom_call.1} parent=1 // pred_fallthru
      _
    %v16 = vld [vmem:[%s0] sm:$0xf]
    %v17 = vld [vmem:[%s0 + $0x4] sm:$0xf]
    %v18 = vld [vmem:[%s0 + $0x8] sm:$0xf]
    %v19 = vld [vmem:[%s0 + $0xc] sm:$0xf]
    %v20 = vld [vmem:[%s0 + $0x10] sm:$0xf]
    %v21 = vld [vmem:[%s0 + $0x14] sm:$0xf]
    %v22 = vld [vmem:[%s0 + $0x18] sm:$0xf]
    %v23 = vld [vmem:[%s0 + $0x1c] sm:$0xf]
    %v24 = vld [vmem:[%s0 + $0x20] sm:$0xf]
    %v25 = vld [vmem:[%s0 + $0x24] sm:$0xf]
    %v26 = vld [vmem:[%s0 + $0x28] sm:$0xf]
    %v27 = vld [vmem:[%s0 + $0x2c] sm:$0xf]
    %v28 = vld [vmem:[%s0 + $0x30] sm:$0xf]
    %v29 = vld [vmem:[%s0 + $0x34] sm:$0xf]
    %v30 = vld [vmem:[%s0 + $0x38] sm:$0xf]
    %v31 = vld [vmem:[%s0 + $0x3c] sm:$0xf]
    %v32 = vld [vmem:[%s0 + $0x40] sm:$0xf]
    %v33 = vld [vmem:[%s0 + $0x44] sm:$0xf]
    %v34 = vld [vmem:[%s0 + $0x48] sm:$0xf]
    %v35 = vld [vmem:[%s0 + $0x4c] sm:$0xf]
    %v36 = vld [vmem:[%s0 + $0x50] sm:$0xf]
    %v37 = vld [vmem:[%s0 + $0x54] sm:$0xf]
    %v38 = vld [vmem:[%s0 + $0x58] sm:$0xf]
    %v39 = vld [vmem:[%s0 + $0x5c] sm:$0xf]
    %v40 = vld [vmem:[%s0 + $0x60] sm:$0xf]
    %v41 = vld [vmem:[%s0 + $0x64] sm:$0xf]
    %v42 = vld [vmem:[%s0 + $0x68] sm:$0xf]
    %v43 = vld [vmem:[%s0 + $0x6c] sm:$0xf]
    %v44 = vld [vmem:[%s0 + $0x70] sm:$0xf]
    %v45 = vld [vmem:[%s0 + $0x74] sm:$0xf]
    %v46 = vld [vmem:[%s0 + $0x78] sm:$0xf]
    %v47 = vld [vmem:[%s0 + $0x7c] sm:$0xf]
    %v48 = vld [vmem:[%s0 + $0x80] sm:$0xf]
    %v49 = vld [vmem:[%s0 + $0x84] sm:$0xf]
    %v50 = vld [vmem:[%s0 + $0x88] sm:$0xf]
    %v51 = vld [vmem:[%s0 + $0x8c] sm:$0xf]
    %v52 = vld [vmem:[%s0 + $0x90] sm:$0xf]
    %v53 = vld [vmem:[%s0 + $0x94] sm:$0xf]
    %v54 = vld [vmem:[%s0 + $0x98] sm:$0xf]
    %v55 = vld [vmem:[%s0 + $0x9c] sm:$0xf]
    %v56 = vld [vmem:[%s0 + $0xa0] sm:$0xf]
    %v57 = vld [vmem:[%s0 + $0xa4] sm:$0xf]
    %v58 = vld [vmem:[%s0 + $0xa8] sm:$0xf]
    %v59 = vld [vmem:[%s0 + $0xac] sm:$0xf]
    %v60 = vld [vmem:[%s0 + $0xb0] sm:$0xf]
    %v61 = vld [vmem:[%s0 + $0xb4] sm:$0xf]
    %v62 = vld [vmem:[%s0 + $0xb8] sm:$0xf]
    %v63 = vld [vmem:[%s0 + $0xbc] sm:$0xf]
    %v64 = vld [vmem:[%s0 + $0xc0] sm:$0xf]
    %v65 = vld [vmem:[%s0 + $0xc4] sm:$0xf]
    %v66 = vld [vmem:[%s0 + $0xc8] sm:$0xf]
    %v67 = vld [vmem:[%s0 + $0xcc] sm:$0xf]
    %v68 = vld [vmem:[%s0 + $0xd0] sm:$0xf]
    %v69 = vld [vmem:[%s0 + $0xd4] sm:$0xf]
    %v70 = vld [vmem:[%s0 + $0xd8] sm:$0xf]
    %v71 = vld [vmem:[%s0 + $0xdc] sm:$0xf]
    %v72 = vld [vmem:[%s0 + $0xe0] sm:$0xf]
    %v73 = vld [vmem:[%s0 + $0xe4] sm:$0xf]
    %v74 = vld [vmem:[%s0 + $0xe8] sm:$0xf]
    %v75 = vld [vmem:[%s0 + $0xec] sm:$0xf]
    %v76 = vld [vmem:[%s0 + $0xf0] sm:$0xf]
    %v77 = vld [vmem:[%s0 + $0xf4] sm:$0xf]
    %v78 = vld [vmem:[%s0 + $0xf8] sm:$0xf]
    %v79 = vld [vmem:[%s0 + $0xfc] sm:$0xf]
    %v80 = vld [vmem:[%s1] sm:$0xf]
    %v145 = vunpack.c.l.b16 %v16
    %v146 = vunpack.c.l.b16 %v17
    %v147 = vunpack.c.l.b16 %v18
    %v148 = vunpack.c.l.b16 %v19
    %v149 = vunpack.c.l.b16 %v20
    %v150 = vunpack.c.l.b16 %v21
    %v151 = vunpack.c.l.b16 %v22
    %v152 = vunpack.c.l.b16 %v23
    %v153 = vunpack.c.l.b16 %v24
    %v154 = vunpack.c.l.b16 %v25
    %v155 = vunpack.c.l.b16 %v26
    %v156 = vunpack.c.l.b16 %v27
    %v157 = vunpack.c.l.b16 %v28
    %v158 = vunpack.c.l.b16 %v29
    %v159 = vunpack.c.l.b16 %v30
    %v160 = vunpack.c.l.b16 %v31
    %v161 = vunpack.c.l.b16 %v32
    %v162 = vunpack.c.l.b16 %v33
    %v163 = vunpack.c.l.b16 %v34
    %v164 = vunpack.c.l.b16 %v35
    %v165 = vunpack.c.l.b16 %v36
    %v166 = vunpack.c.l.b16 %v37
    %v167 = vunpack.c.l.b16 %v38
    %v168 = vunpack.c.l.b16 %v39
    %v169 = vunpack.c.l.b16 %v40
    %v170 = vunpack.c.l.b16 %v41
    %v171 = vunpack.c.l.b16 %v42
    %v172 = vunpack.c.l.b16 %v43
    %v173 = vunpack.c.l.b16 %v44
    %v174 = vunpack.c.l.b16 %v45
    %v175 = vunpack.c.l.b16 %v46
    %v176 = vunpack.c.l.b16 %v47
    %v177 = vunpack.c.l.b16 %v48
    %v178 = vunpack.c.l.b16 %v49
    %v179 = vunpack.c.l.b16 %v50
    %v180 = vunpack.c.l.b16 %v51
    %v181 = vunpack.c.l.b16 %v52
    %v182 = vunpack.c.l.b16 %v53
    %v183 = vunpack.c.l.b16 %v54
    %v184 = vunpack.c.l.b16 %v55
    %v185 = vunpack.c.l.b16 %v56
    %v186 = vunpack.c.l.b16 %v57
    %v187 = vunpack.c.l.b16 %v58
    %v188 = vunpack.c.l.b16 %v59
    %v189 = vunpack.c.l.b16 %v60
    %v190 = vunpack.c.l.b16 %v61
    %v191 = vunpack.c.l.b16 %v62
    %v192 = vunpack.c.l.b16 %v63
    %v193 = vunpack.c.l.b16 %v64
    %v194 = vunpack.c.l.b16 %v65
    %v195 = vunpack.c.l.b16 %v66
    %v196 = vunpack.c.l.b16 %v67
    %v197 = vunpack.c.l.b16 %v68
    %v198 = vunpack.c.l.b16 %v69
    %v199 = vunpack.c.l.b16 %v70
    %v200 = vunpack.c.l.b16 %v71
    %v201 = vunpack.c.l.b16 %v72
    %v202 = vunpack.c.l.b16 %v73
    %v203 = vunpack.c.l.b16 %v74
    %v204 = vunpack.c.l.b16 %v75
    %v205 = vunpack.c.l.b16 %v76
    %v206 = vunpack.c.l.b16 %v77
    %v207 = vunpack.c.l.b16 %v78
    %v208 = vunpack.c.l.b16 %v79
    %v209 = vpack.c.b16 %v146, %v145
    %v210 = vpack.c.b16 %v148, %v147
    %v211 = vpack.c.b16 %v150, %v149
    %v212 = vpack.c.b16 %v152, %v151
    %v213 = vpack.c.b16 %v154, %v153
    %v214 = vpack.c.b16 %v156, %v155
    %v215 = vpack.c.b16 %v158, %v157
    %v216 = vpack.c.b16 %v160, %v159
    %v217 = vpack.c.b16 %v162, %v161
    %v218 = vpack.c.b16 %v164, %v163
    %v219 = vpack.c.b16 %v166, %v165
    %v220 = vpack.c.b16 %v168, %v167
    %v221 = vpack.c.b16 %v170, %v169
    %v222 = vpack.c.b16 %v172, %v171
    %v223 = vpack.c.b16 %v174, %v173
    %v224 = vpack.c.b16 %v176, %v175
    %v225 = vpack.c.b16 %v178, %v177
    %v226 = vpack.c.b16 %v180, %v179
    %v227 = vpack.c.b16 %v182, %v181
    %v228 = vpack.c.b16 %v184, %v183
    %v229 = vpack.c.b16 %v186, %v185
    %v230 = vpack.c.b16 %v188, %v187
    %v231 = vpack.c.b16 %v190, %v189
    %v232 = vpack.c.b16 %v192, %v191
    %v233 = vpack.c.b16 %v194, %v193
    %v234 = vpack.c.b16 %v196, %v195
    %v235 = vpack.c.b16 %v198, %v197
    %v236 = vpack.c.b16 %v200, %v199
    %v237 = vpack.c.b16 %v202, %v201
    %v238 = vpack.c.b16 %v204, %v203
    %v239 = vpack.c.b16 %v206, %v205
    %v240 = vpack.c.b16 %v208, %v207
    %vm241 = vcmask 64512
    %v243 = vsel %vm241, %v209, 0
    %v246 = vsel %vm241, %v210, 0
    %v249 = vsel %vm241, %v211, 0
    %v252 = vsel %vm241, %v212, 0
    %v255 = vsel %vm241, %v213, 0
    %v258 = vsel %vm241, %v214, 0
    %v261 = vsel %vm241, %v215, 0
    %v264 = vsel %vm241, %v216, 0
    %v267 = vsel %vm241, %v217, 0
    %v270 = vsel %vm241, %v218, 0
    %v273 = vsel %vm241, %v219, 0
    %v276 = vsel %vm241, %v220, 0
    %v279 = vsel %vm241, %v221, 0
    %v282 = vsel %vm241, %v222, 0
    %v285 = vsel %vm241, %v223, 0
    %v288 = vsel %vm241, %v224, 0
    %v291 = vsel %vm241, %v225, 0
    %v294 = vsel %vm241, %v226, 0
    %v297 = vsel %vm241, %v227, 0
    %v300 = vsel %vm241, %v228, 0
    %v303 = vsel %vm241, %v229, 0
    %v306 = vsel %vm241, %v230, 0
    %v309 = vsel %vm241, %v231, 0
    %v312 = vsel %vm241, %v232, 0
    %v315 = vsel %vm241, %v233, 0
    %v318 = vsel %vm241, %v234, 0
    %v321 = vsel %vm241, %v235, 0
    %v324 = vsel %vm241, %v236, 0
    %v327 = vsel %vm241, %v237, 0
    %v330 = vsel %vm241, %v238, 0
    %v333 = vsel %vm241, %v239, 0
    %v336 = vsel %vm241, %v240, 0
    %vm338 = vcmask 1043456
    %v340 = vsel %vm338, %v80, 0
    %342 = vmatprep.subr.bf16.mxu0 0
    %343 = vmatpush1.bf16.msra.mxu0 %v340
    %344 = vmatprep.subr.bf16.mxu0 0
    %345 = vmatpush1.bf16.msra.mxu0 0
    %346 = vmatprep.subr.bf16.mxu0 0
    %347 = vmatpush1.bf16.msra.mxu0 0
    %348 = vmatprep.subr.bf16.mxu0 0
    %349 = vmatpush1.bf16.msra.mxu0 0
    %350 = vmatprep.subr.bf16.mxu0 0
    %351 = vmatpush1.bf16.msra.mxu0 0
    %352 = vmatprep.subr.bf16.mxu0 0
    %353 = vmatpush1.bf16.msra.mxu0 0
    %354 = vmatprep.subr.bf16.mxu0 0
    %355 = vmatpush1.bf16.msra.mxu0 0
    %356 = vmatprep.subr.bf16.mxu0 0
    %357 = vmatpush1.bf16.msra.mxu0 0
    %358 = vmatprep.subr.bf16.mxu0 0
    %359 = vmatpush1.bf16.msra.mxu0 0
    %360 = vmatprep.subr.bf16.mxu0 0
    %361 = vmatpush1.bf16.msra.mxu0 0
    %362 = vmatprep.subr.bf16.mxu0 0
    %363 = vmatpush1.bf16.msra.mxu0 0
    %364 = vmatprep.subr.bf16.mxu0 0
    %365 = vmatpush1.bf16.msra.mxu0 0
    %366 = vmatprep.subr.bf16.mxu0 0
    %367 = vmatpush1.bf16.msra.mxu0 0
    %368 = vmatprep.subr.bf16.mxu0 0
    %369 = vmatpush1.bf16.msra.mxu0 0
    %370 = vmatprep.subr.bf16.mxu0 0
    %371 = vmatpush1.bf16.msra.mxu0 0
    %372 = vmatprep.subr.bf16.mxu0 0
    %373 = vmatpush1.bf16.msra.mxu0 0
    %374 = vmatprep.mubr.bf16.mxu0 0
    %375 = vmatmul.mubr.bf16.gmra.mrb[0].mxu0 %v243
    %v376 = vpop.f32.mrb[0].mxu0
    %v377 = vadd.f32 0.0, %v376
    %v378 = vpop.f32.mrb[0].mxu0
    %v379 = vpop.f32.mrb[0].mxu0
    %v380 = vadd.f32 0.0, %v379
    %v381 = vpop.f32.mrb[0].mxu0
    %382 = vmatprep.mubr.bf16.mxu0 0
    %383 = vmatmul.mubr.bf16.gmra.mrb[0].mxu0 %v246
    %v384 = vpop.f32.mrb[0].mxu0
    %v385 = vadd.f32 0.0, %v384
    %v386 = vpop.f32.mrb[0].mxu0
    %v387 = vpop.f32.mrb[0].mxu0
    %v388 = vadd.f32 0.0, %v387
    %v389 = vpop.f32.mrb[0].mxu0
    %390 = vmatprep.mubr.bf16.mxu0 0
    %391 = vmatmul.mubr.bf16.gmra.mrb[0].mxu0 %v249
    %v392 = vpop.f32.mrb[0].mxu0
    %v393 = vadd.f32 0.0, %v392
    %v394 = vpop.f32.mrb[0].mxu0
    %v395 = vpop.f32.mrb[0].mxu0
    %v396 = vadd.f32 0.0, %v395
    %v397 = vpop.f32.mrb[0].mxu0
    %398 = vmatprep.mubr.bf16.mxu0 0
    %399 = vmatmul.mubr.bf16.gmra.mrb[0].mxu0 %v252
    %v400 = vpop.f32.mrb[0].mxu0
    %v401 = vadd.f32 0.0, %v400
    %v402 = vpop.f32.mrb[0].mxu0
    %v403 = vpop.f32.mrb[0].mxu0
    %v404 = vadd.f32 0.0, %v403
    %v405 = vpop.f32.mrb[0].mxu0
    %406 = vmatprep.mubr.bf16.mxu0 0
    %407 = vmatmul.mubr.bf16.gmra.mrb[0].mxu0 %v255
    %v408 = vpop.f32.mrb[0].mxu0
    %v409 = vadd.f32 0.0, %v408
    %v410 = vpop.f32.mrb[0].mxu0
    %v411 = vpop.f32.mrb[0].mxu0
    %v412 = vadd.f32 0.0, %v411
    %v413 = vpop.f32.mrb[0].mxu0
    %414 = vmatprep.mubr.bf16.mxu0 0
    %415 = vmatmul.mubr.bf16.gmra.mrb[0].mxu0 %v258
    %v416 = vpop.f32.mrb[0].mxu0
    %v417 = vadd.f32 0.0, %v416
    %v418 = vpop.f32.mrb[0].mxu0
    %v419 = vpop.f32.mrb[0].mxu0
    %v420 = vadd.f32 0.0, %v419
    %v421 = vpop.f32.mrb[0].mxu0
    %422 = vmatprep.mubr.bf16.mxu0 0
    %423 = vmatmul.mubr.bf16.gmra.mrb[0].mxu0 %v261
    %v424 = vpop.f32.mrb[0].mxu0
    %v425 = vadd.f32 0.0, %v424
    %v426 = vpop.f32.mrb[0].mxu0
    %v427 = vpop.f32.mrb[0].mxu0
    %v428 = vadd.f32 0.0, %v427
    %v429 = vpop.f32.mrb[0].mxu0
    %430 = vmatprep.mubr.bf16.mxu0 0
    %431 = vmatmul.mubr.bf16.gmra.mrb[0].mxu0 %v264
    %v432 = vpop.f32.mrb[0].mxu0
    %v433 = vadd.f32 0.0, %v432
    %v434 = vpop.f32.mrb[0].mxu0
    %v435 = vpop.f32.mrb[0].mxu0
    %v436 = vadd.f32 0.0, %v435
    %v437 = vpop.f32.mrb[0].mxu0
    %438 = vmatprep.mubr.bf16.mxu0 0
    %439 = vmatmul.mubr.bf16.gmra.mrb[0].mxu0 %v267
    %v440 = vpop.f32.mrb[0].mxu0
    %v441 = vadd.f32 0.0, %v440
    %v442 = vpop.f32.mrb[0].mxu0
    %v443 = vpop.f32.mrb[0].mxu0
    %v444 = vadd.f32 0.0, %v443
    %v445 = vpop.f32.mrb[0].mxu0
    %446 = vmatprep.mubr.bf16.mxu0 0
    %447 = vmatmul.mubr.bf16.gmra.mrb[0].mxu0 %v270
    %v448 = vpop.f32.mrb[0].mxu0
    %v449 = vadd.f32 0.0, %v448
    %v450 = vpop.f32.mrb[0].mxu0
    %v451 = vpop.f32.mrb[0].mxu0
    %v452 = vadd.f32 0.0, %v451
    %v453 = vpop.f32.mrb[0].mxu0
    %454 = vmatprep.mubr.bf16.mxu0 0
    %455 = vmatmul.mubr.bf16.gmra.mrb[0].mxu0 %v273
    %v456 = vpop.f32.mrb[0].mxu0
    %v457 = vadd.f32 0.0, %v456
    %v458 = vpop.f32.mrb[0].mxu0
    %v459 = vpop.f32.mrb[0].mxu0
    %v460 = vadd.f32 0.0, %v459
    %v461 = vpop.f32.mrb[0].mxu0
    %462 = vmatprep.mubr.bf16.mxu0 0
    %463 = vmatmul.mubr.bf16.gmra.mrb[0].mxu0 %v276
    %v464 = vpop.f32.mrb[0].mxu0
    %v465 = vadd.f32 0.0, %v464
    %v466 = vpop.f32.mrb[0].mxu0
    %v467 = vpop.f32.mrb[0].mxu0
    %v468 = vadd.f32 0.0, %v467
    %v469 = vpop.f32.mrb[0].mxu0
    %470 = vmatprep.mubr.bf16.mxu0 0
    %471 = vmatmul.mubr.bf16.gmra.mrb[0].mxu0 %v279
    %v472 = vpop.f32.mrb[0].mxu0
    %v473 = vadd.f32 0.0, %v472
    %v474 = vpop.f32.mrb[0].mxu0
    %v475 = vpop.f32.mrb[0].mxu0
    %v476 = vadd.f32 0.0, %v475
    %v477 = vpop.f32.mrb[0].mxu0
    %478 = vmatprep.mubr.bf16.mxu0 0
    %479 = vmatmul.mubr.bf16.gmra.mrb[0].mxu0 %v282
    %v480 = vpop.f32.mrb[0].mxu0
    %v481 = vadd.f32 0.0, %v480
    %v482 = vpop.f32.mrb[0].mxu0
    %v483 = vpop.f32.mrb[0].mxu0
    %v484 = vadd.f32 0.0, %v483
    %v485 = vpop.f32.mrb[0].mxu0
    %486 = vmatprep.mubr.bf16.mxu0 0
    %487 = vmatmul.mubr.bf16.gmra.mrb[0].mxu0 %v285
    %v488 = vpop.f32.mrb[0].mxu0
    %v489 = vadd.f32 0.0, %v488
    %v490 = vpop.f32.mrb[0].mxu0
    %v491 = vpop.f32.mrb[0].mxu0
    %v492 = vadd.f32 0.0, %v491
    %v493 = vpop.f32.mrb[0].mxu0
    %494 = vmatprep.mubr.bf16.mxu0 0
    %495 = vmatmul.mubr.bf16.gmra.mrb[0].mxu0 %v288
    %v496 = vpop.f32.mrb[0].mxu0
    %v497 = vadd.f32 0.0, %v496
    %v498 = vpop.f32.mrb[0].mxu0
    %v499 = vpop.f32.mrb[0].mxu0
    %v500 = vadd.f32 0.0, %v499
    %v501 = vpop.f32.mrb[0].mxu0
    %502 = vmatprep.mubr.bf16.mxu0 0
    %503 = vmatmul.mubr.bf16.gmra.mrb[0].mxu0 %v291
    %v504 = vpop.f32.mrb[0].mxu0
    %v505 = vadd.f32 0.0, %v504
    %v506 = vpop.f32.mrb[0].mxu0
    %v507 = vpop.f32.mrb[0].mxu0
    %v508 = vadd.f32 0.0, %v507
    %v509 = vpop.f32.mrb[0].mxu0
    %510 = vmatprep.mubr.bf16.mxu0 0
    %511 = vmatmul.mubr.bf16.gmra.mrb[0].mxu0 %v294
    %v512 = vpop.f32.mrb[0].mxu0
    %v513 = vadd.f32 0.0, %v512
    %v514 = vpop.f32.mrb[0].mxu0
    %v515 = vpop.f32.mrb[0].mxu0
    %v516 = vadd.f32 0.0, %v515
    %v517 = vpop.f32.mrb[0].mxu0
    %518 = vmatprep.mubr.bf16.mxu0 0
    %519 = vmatmul.mubr.bf16.gmra.mrb[0].mxu0 %v297
    %v520 = vpop.f32.mrb[0].mxu0
    %v521 = vadd.f32 0.0, %v520
    %v522 = vpop.f32.mrb[0].mxu0
    %v523 = vpop.f32.mrb[0].mxu0
    %v524 = vadd.f32 0.0, %v523
    %v525 = vpop.f32.mrb[0].mxu0
    %526 = vmatprep.mubr.bf16.mxu0 0
    %527 = vmatmul.mubr.bf16.gmra.mrb[0].mxu0 %v300
    %v528 = vpop.f32.mrb[0].mxu0
    %v529 = vadd.f32 0.0, %v528
    %v530 = vpop.f32.mrb[0].mxu0
    %v531 = vpop.f32.mrb[0].mxu0
    %v532 = vadd.f32 0.0, %v531
    %v533 = vpop.f32.mrb[0].mxu0
    %534 = vmatprep.mubr.bf16.mxu0 0
    %535 = vmatmul.mubr.bf16.gmra.mrb[0].mxu0 %v303
    %v536 = vpop.f32.mrb[0].mxu0
    %v537 = vadd.f32 0.0, %v536
    %v538 = vpop.f32.mrb[0].mxu0
    %v539 = vpop.f32.mrb[0].mxu0
    %v540 = vadd.f32 0.0, %v539
    %v541 = vpop.f32.mrb[0].mxu0
    %542 = vmatprep.mubr.bf16.mxu0 0
    %543 = vmatmul.mubr.bf16.gmra.mrb[0].mxu0 %v306
    %v544 = vpop.f32.mrb[0].mxu0
    %v545 = vadd.f32 0.0, %v544
    %v546 = vpop.f32.mrb[0].mxu0
    %v547 = vpop.f32.mrb[0].mxu0
    %v548 = vadd.f32 0.0, %v547
    %v549 = vpop.f32.mrb[0].mxu0
    %550 = vmatprep.mubr.bf16.mxu0 0
    %551 = vmatmul.mubr.bf16.gmra.mrb[0].mxu0 %v309
    %v552 = vpop.f32.mrb[0].mxu0
    %v553 = vadd.f32 0.0, %v552
    %v554 = vpop.f32.mrb[0].mxu0
    %v555 = vpop.f32.mrb[0].mxu0
    %v556 = vadd.f32 0.0, %v555
    %v557 = vpop.f32.mrb[0].mxu0
    %558 = vmatprep.mubr.bf16.mxu0 0
    %559 = vmatmul.mubr.bf16.gmra.mrb[0].mxu0 %v312
    %v560 = vpop.f32.mrb[0].mxu0
    %v561 = vadd.f32 0.0, %v560
    %v562 = vpop.f32.mrb[0].mxu0
    %v563 = vpop.f32.mrb[0].mxu0
    %v564 = vadd.f32 0.0, %v563
    %v565 = vpop.f32.mrb[0].mxu0
    %566 = vmatprep.mubr.bf16.mxu0 0
    %567 = vmatmul.mubr.bf16.gmra.mrb[0].mxu0 %v315
    %v568 = vpop.f32.mrb[0].mxu0
    %v569 = vadd.f32 0.0, %v568
    %v570 = vpop.f32.mrb[0].mxu0
    %v571 = vpop.f32.mrb[0].mxu0
    %v572 = vadd.f32 0.0, %v571
    %v573 = vpop.f32.mrb[0].mxu0
    %574 = vmatprep.mubr.bf16.mxu0 0
    %575 = vmatmul.mubr.bf16.gmra.mrb[0].mxu0 %v318
    %v576 = vpop.f32.mrb[0].mxu0
    %v577 = vadd.f32 0.0, %v576
    %v578 = vpop.f32.mrb[0].mxu0
    %v579 = vpop.f32.mrb[0].mxu0
    %v580 = vadd.f32 0.0, %v579
    %v581 = vpop.f32.mrb[0].mxu0
    %582 = vmatprep.mubr.bf16.mxu0 0
    %583 = vmatmul.mubr.bf16.gmra.mrb[0].mxu0 %v321
    %v584 = vpop.f32.mrb[0].mxu0
    %v585 = vadd.f32 0.0, %v584
    %v586 = vpop.f32.mrb[0].mxu0
    %v587 = vpop.f32.mrb[0].mxu0
    %v588 = vadd.f32 0.0, %v587
    %v589 = vpop.f32.mrb[0].mxu0
    %590 = vmatprep.mubr.bf16.mxu0 0
    %591 = vmatmul.mubr.bf16.gmra.mrb[0].mxu0 %v324
    %v592 = vpop.f32.mrb[0].mxu0
    %v593 = vadd.f32 0.0, %v592
    %v594 = vpop.f32.mrb[0].mxu0
    %v595 = vpop.f32.mrb[0].mxu0
    %v596 = vadd.f32 0.0, %v595
    %v597 = vpop.f32.mrb[0].mxu0
    %598 = vmatprep.mubr.bf16.mxu0 0
    %599 = vmatmul.mubr.bf16.gmra.mrb[0].mxu0 %v327
    %v600 = vpop.f32.mrb[0].mxu0
    %v601 = vadd.f32 0.0, %v600
    %v602 = vpop.f32.mrb[0].mxu0
    %v603 = vpop.f32.mrb[0].mxu0
    %v604 = vadd.f32 0.0, %v603
    %v605 = vpop.f32.mrb[0].mxu0
    %606 = vmatprep.mubr.bf16.mxu0 0
    %607 = vmatmul.mubr.bf16.gmra.mrb[0].mxu0 %v330
    %v608 = vpop.f32.mrb[0].mxu0
    %v609 = vadd.f32 0.0, %v608
    %v610 = vpop.f32.mrb[0].mxu0
    %v611 = vpop.f32.mrb[0].mxu0
    %v612 = vadd.f32 0.0, %v611
    %v613 = vpop.f32.mrb[0].mxu0
    %614 = vmatprep.mubr.bf16.mxu0 0
    %615 = vmatmul.mubr.bf16.gmra.mrb[0].mxu0 %v333
    %v616 = vpop.f32.mrb[0].mxu0
    %v617 = vadd.f32 0.0, %v616
    %v618 = vpop.f32.mrb[0].mxu0
    %v619 = vpop.f32.mrb[0].mxu0
    %v620 = vadd.f32 0.0, %v619
    %v621 = vpop.f32.mrb[0].mxu0
    %622 = vmatprep.mubr.bf16.mxu0 0
    %623 = vmatmul.mubr.bf16.gmra.mrb[0].mxu0 %v336
    %v624 = vpop.f32.mrb[0].mxu0
    %v625 = vadd.f32 0.0, %v624
    %v626 = vpop.f32.mrb[0].mxu0
    %v627 = vpop.f32.mrb[0].mxu0
    %v628 = vadd.f32 0.0, %v627
    %v629 = vpop.f32.mrb[0].mxu0
    %630 = vdwg.mxu0
    %v631 = vld [vmem:[%s2] sm:$0x3]
    %v632 = vadd.f32 %v377, %v380
    %v633 = vadd.f32 %v632, %v385
    %v634 = vadd.f32 %v633, %v388
    %v635 = vadd.f32 %v634, %v393
    %v636 = vadd.f32 %v635, %v396
    %v637 = vadd.f32 %v636, %v401
    %v638 = vadd.f32 %v637, %v404
    %v639 = vadd.f32 %v638, %v409
    %v640 = vadd.f32 %v639, %v412
    %v641 = vadd.f32 %v640, %v417
    %v642 = vadd.f32 %v641, %v420
    %v643 = vadd.f32 %v642, %v425
    %v644 = vadd.f32 %v643, %v428
    %v645 = vadd.f32 %v644, %v433
    %v646 = vadd.f32 %v645, %v436
    %v647 = vadd.f32 %v646, %v441
    %v648 = vadd.f32 %v647, %v444
    %v649 = vadd.f32 %v648, %v449
    %v650 = vadd.f32 %v649, %v452
    %v651 = vadd.f32 %v650, %v457
    %v652 = vadd.f32 %v651, %v460
    %v653 = vadd.f32 %v652, %v465
    %v654 = vadd.f32 %v653, %v468
    %v655 = vadd.f32 %v654, %v473
    %v656 = vadd.f32 %v655, %v476
    %v657 = vadd.f32 %v656, %v481
    %v658 = vadd.f32 %v657, %v484
    %v659 = vadd.f32 %v658, %v489
    %v660 = vadd.f32 %v659, %v492
    %v661 = vadd.f32 %v660, %v497
    %v662 = vadd.f32 %v661, %v500
    %v663 = vadd.f32 %v662, %v505
    %v664 = vadd.f32 %v663, %v508
    %v665 = vadd.f32 %v664, %v513
    %v666 = vadd.f32 %v665, %v516
    %v667 = vadd.f32 %v666, %v521
    %v668 = vadd.f32 %v667, %v524
    %v669 = vadd.f32 %v668, %v529
    %v670 = vadd.f32 %v669, %v532
    %v671 = vadd.f32 %v670, %v537
    %v672 = vadd.f32 %v671, %v540
    %v673 = vadd.f32 %v672, %v545
    %v674 = vadd.f32 %v673, %v548
    %v675 = vadd.f32 %v674, %v553
    %v676 = vadd.f32 %v675, %v556
    %v677 = vadd.f32 %v676, %v561
    %v678 = vadd.f32 %v677, %v564
    %v679 = vadd.f32 %v678, %v569
    %v680 = vadd.f32 %v679, %v572
    %v681 = vadd.f32 %v680, %v577
    %v682 = vadd.f32 %v681, %v580
    %v683 = vadd.f32 %v682, %v585
    %v684 = vadd.f32 %v683, %v588
    %v685 = vadd.f32 %v684, %v593
    %v686 = vadd.f32 %v685, %v596
    %v687 = vadd.f32 %v686, %v601
    %v688 = vadd.f32 %v687, %v604
    %v689 = vadd.f32 %v688, %v609
    %v690 = vadd.f32 %v689, %v612
    %v691 = vadd.f32 %v690, %v617
    %v692 = vadd.f32 %v691, %v620
    %v693 = vadd.f32 %v692, %v625
    %v694 = vadd.f32 %v693, %v628
    %v695 = vrot.slane %v694, 4
    %v696 = vadd.f32 %v694, %v695
    %v697 = vrot.slane %v696, 2
    %v698 = vadd.f32 %v696, %v697
    %v699 = vrot.slane %v698, 1
    %v700 = vadd.f32 %v698, %v699
    %v701 = vrcp.pop 512.0
    %v702 = vmul.f32 %v700, %v701
    %v703 = vsub.f32 %v377, %v702
    %v704 = vsub.f32 %v380, %v702
    %v705 = vsub.f32 %v385, %v702
    %v706 = vsub.f32 %v388, %v702
    %v707 = vsub.f32 %v393, %v702
    %v708 = vsub.f32 %v396, %v702
    %v709 = vsub.f32 %v401, %v702
    %v710 = vsub.f32 %v404, %v702
    %v711 = vsub.f32 %v409, %v702
    %v712 = vsub.f32 %v412, %v702
    %v713 = vsub.f32 %v417, %v702
    %v714 = vsub.f32 %v420, %v702
    %v715 = vsub.f32 %v425, %v702
    %v716 = vsub.f32 %v428, %v702
    %v717 = vsub.f32 %v433, %v702
    %v718 = vsub.f32 %v436, %v702
    %v719 = vsub.f32 %v441, %v702
    %v720 = vsub.f32 %v444, %v702
    %v721 = vsub.f32 %v449, %v702
    %v722 = vsub.f32 %v452, %v702
    %v723 = vsub.f32 %v457, %v702
    %v724 = vsub.f32 %v460, %v702
    %v725 = vsub.f32 %v465, %v702
    %v726 = vsub.f32 %v468, %v702
    %v727 = vsub.f32 %v473, %v702
    %v728 = vsub.f32 %v476, %v702
    %v729 = vsub.f32 %v481, %v702
    %v730 = vsub.f32 %v484, %v702
    %v731 = vsub.f32 %v489, %v702
    %v732 = vsub.f32 %v492, %v702
    %v733 = vsub.f32 %v497, %v702
    %v734 = vsub.f32 %v500, %v702
    %v735 = vsub.f32 %v505, %v702
    %v736 = vsub.f32 %v508, %v702
    %v737 = vsub.f32 %v513, %v702
    %v738 = vsub.f32 %v516, %v702
    %v739 = vsub.f32 %v521, %v702
    %v740 = vsub.f32 %v524, %v702
    %v741 = vsub.f32 %v529, %v702
    %v742 = vsub.f32 %v532, %v702
    %v743 = vsub.f32 %v537, %v702
    %v744 = vsub.f32 %v540, %v702
    %v745 = vsub.f32 %v545, %v702
    %v746 = vsub.f32 %v548, %v702
    %v747 = vsub.f32 %v553, %v702
    %v748 = vsub.f32 %v556, %v702
    %v749 = vsub.f32 %v561, %v702
    %v750 = vsub.f32 %v564, %v702
    %v751 = vsub.f32 %v569, %v702
    %v752 = vsub.f32 %v572, %v702
    %v753 = vsub.f32 %v577, %v702
    %v754 = vsub.f32 %v580, %v702
    %v755 = vsub.f32 %v585, %v702
    %v756 = vsub.f32 %v588, %v702
    %v757 = vsub.f32 %v593, %v702
    %v758 = vsub.f32 %v596, %v702
    %v759 = vsub.f32 %v601, %v702
    %v760 = vsub.f32 %v604, %v702
    %v761 = vsub.f32 %v609, %v702
    %v762 = vsub.f32 %v612, %v702
    %v763 = vsub.f32 %v617, %v702
    %v764 = vsub.f32 %v620, %v702
    %v765 = vsub.f32 %v625, %v702
    %v766 = vsub.f32 %v628, %v702
    %v767 = vmul.f32 %v703, %v703
    %v768 = vmul.f32 %v704, %v704
    %v769 = vmul.f32 %v705, %v705
    %v770 = vmul.f32 %v706, %v706
    %v771 = vmul.f32 %v707, %v707
    %v772 = vmul.f32 %v708, %v708
    %v773 = vmul.f32 %v709, %v709
    %v774 = vmul.f32 %v710, %v710
    %v775 = vmul.f32 %v711, %v711
    %v776 = vmul.f32 %v712, %v712
    %v777 = vmul.f32 %v713, %v713
    %v778 = vmul.f32 %v714, %v714
    %v779 = vmul.f32 %v715, %v715
    %v780 = vmul.f32 %v716, %v716
    %v781 = vmul.f32 %v717, %v717
    %v782 = vmul.f32 %v718, %v718
    %v783 = vmul.f32 %v719, %v719
    %v784 = vmul.f32 %v720, %v720
    %v785 = vmul.f32 %v721, %v721
    %v786 = vmul.f32 %v722, %v722
    %v787 = vmul.f32 %v723, %v723
    %v788 = vmul.f32 %v724, %v724
    %v789 = vmul.f32 %v725, %v725
    %v790 = vmul.f32 %v726, %v726
    %v791 = vmul.f32 %v727, %v727
    %v792 = vmul.f32 %v728, %v728
    %v793 = vmul.f32 %v729, %v729
    %v794 = vmul.f32 %v730, %v730
    %v795 = vmul.f32 %v731, %v731
    %v796 = vmul.f32 %v732, %v732
    %v797 = vmul.f32 %v733, %v733
    %v798 = vmul.f32 %v734, %v734
    %v799 = vmul.f32 %v735, %v735
    %v800 = vmul.f32 %v736, %v736
    %v801 = vmul.f32 %v737, %v737
    %v802 = vmul.f32 %v738, %v738
    %v803 = vmul.f32 %v739, %v739
    %v804 = vmul.f32 %v740, %v740
    %v805 = vmul.f32 %v741, %v741
    %v806 = vmul.f32 %v742, %v742
    %v807 = vmul.f32 %v743, %v743
    %v808 = vmul.f32 %v744, %v744
    %v809 = vmul.f32 %v745, %v745
    %v810 = vmul.f32 %v746, %v746
    %v811 = vmul.f32 %v747, %v747
    %v812 = vmul.f32 %v748, %v748
    %v813 = vmul.f32 %v749, %v749
    %v814 = vmul.f32 %v750, %v750
    %v815 = vmul.f32 %v751, %v751
    %v816 = vmul.f32 %v752, %v752
    %v817 = vmul.f32 %v753, %v753
    %v818 = vmul.f32 %v754, %v754
    %v819 = vmul.f32 %v755, %v755
    %v820 = vmul.f32 %v756, %v756
    %v821 = vmul.f32 %v757, %v757
    %v822 = vmul.f32 %v758, %v758
    %v823 = vmul.f32 %v759, %v759
    %v824 = vmul.f32 %v760, %v760
    %v825 = vmul.f32 %v761, %v761
    %v826 = vmul.f32 %v762, %v762
    %v827 = vmul.f32 %v763, %v763
    %v828 = vmul.f32 %v764, %v764
    %v829 = vmul.f32 %v765, %v765
    %v830 = vmul.f32 %v766, %v766
    %v831 = vadd.f32 %v767, %v768
    %v832 = vadd.f32 %v831, %v769
    %v833 = vadd.f32 %v832, %v770
    %v834 = vadd.f32 %v833, %v771
    %v835 = vadd.f32 %v834, %v772
    %v836 = vadd.f32 %v835, %v773
    %v837 = vadd.f32 %v836, %v774
    %v838 = vadd.f32 %v837, %v775
    %v839 = vadd.f32 %v838, %v776
    %v840 = vadd.f32 %v839, %v777
    %v841 = vadd.f32 %v840, %v778
    %v842 = vadd.f32 %v841, %v779
    %v843 = vadd.f32 %v842, %v780
    %v844 = vadd.f32 %v843, %v781
    %v845 = vadd.f32 %v844, %v782
    %v846 = vadd.f32 %v845, %v783
    %v847 = vadd.f32 %v846, %v784
    %v848 = vadd.f32 %v847, %v785
    %v849 = vadd.f32 %v848, %v786
    %v850 = vadd.f32 %v849, %v787
    %v851 = vadd.f32 %v850, %v788
    %v852 = vadd.f32 %v851, %v789
    %v853 = vadd.f32 %v852, %v790
    %v854 = vadd.f32 %v853, %v791
    %v855 = vadd.f32 %v854, %v792
    %v856 = vadd.f32 %v855, %v793
    %v857 = vadd.f32 %v856, %v794
    %v858 = vadd.f32 %v857, %v795
    %v859 = vadd.f32 %v858, %v796
    %v860 = vadd.f32 %v859, %v797
    %v861 = vadd.f32 %v860, %v798
    %v862 = vadd.f32 %v861, %v799
    %v863 = vadd.f32 %v862, %v800
    %v864 = vadd.f32 %v863, %v801
    %v865 = vadd.f32 %v864, %v802
    %v866 = vadd.f32 %v865, %v803
    %v867 = vadd.f32 %v866, %v804
    %v868 = vadd.f32 %v867, %v805
    %v869 = vadd.f32 %v868, %v806
    %v870 = vadd.f32 %v869, %v807
    %v871 = vadd.f32 %v870, %v808
    %v872 = vadd.f32 %v871, %v809
    %v873 = vadd.f32 %v872, %v810
    %v874 = vadd.f32 %v873, %v811
    %v875 = vadd.f32 %v874, %v812
    %v876 = vadd.f32 %v875, %v813
    %v877 = vadd.f32 %v876, %v814
    %v878 = vadd.f32 %v877, %v815
    %v879 = vadd.f32 %v878, %v816
    %v880 = vadd.f32 %v879, %v817
    %v881 = vadd.f32 %v880, %v818
    %v882 = vadd.f32 %v881, %v819
    %v883 = vadd.f32 %v882, %v820
    %v884 = vadd.f32 %v883, %v821
    %v885 = vadd.f32 %v884, %v822
    %v886 = vadd.f32 %v885, %v823
    %v887 = vadd.f32 %v886, %v824
    %v888 = vadd.f32 %v887, %v825
    %v889 = vadd.f32 %v888, %v826
    %v890 = vadd.f32 %v889, %v827
    %v891 = vadd.f32 %v890, %v828
    %v892 = vadd.f32 %v891, %v829
    %v893 = vadd.f32 %v892, %v830
    %v894 = vrot.slane %v893, 4
    %v895 = vadd.f32 %v893, %v894
    %v896 = vrot.slane %v895, 2
    %v897 = vadd.f32 %v895, %v896
    %v898 = vrot.slane %v897, 1
    %v899 = vadd.f32 %v897, %v898
    %v900 = vmul.f32 %v899, %v701
    %v901 = vadd.f32 %v900, 1e-05
    %v902 = vrsqrt.pop %v901
    %v903 = vmul.f32 %v631, %v902
    %v904 = vmul.f32 %v702, %v903
    %v906 = vrot.slane %v904, 7
    %v908 = vsub.f32 %v631, %v906
    %v909 = vlaneseq
    %v910 = vshrl.u32 %v909, 7
    %v911 = vsub.s32 0, %v910
    %v912 = vrot.slane %v903, %v911
    %v913 = vmul.f32 %v377, %v912
    %v914 = vmul.f32 %v380, %v912
    %v915 = vmul.f32 %v385, %v912
    %v916 = vmul.f32 %v388, %v912
    %v917 = vmul.f32 %v393, %v912
    %v918 = vmul.f32 %v396, %v912
    %v919 = vmul.f32 %v401, %v912
    %v920 = vmul.f32 %v404, %v912
    %v921 = vmul.f32 %v409, %v912
    %v922 = vmul.f32 %v412, %v912
    %v923 = vmul.f32 %v417, %v912
    %v924 = vmul.f32 %v420, %v912
    %v925 = vmul.f32 %v425, %v912
    %v926 = vmul.f32 %v428, %v912
    %v927 = vmul.f32 %v433, %v912
    %v928 = vmul.f32 %v436, %v912
    %v929 = vmul.f32 %v441, %v912
    %v930 = vmul.f32 %v444, %v912
    %v931 = vmul.f32 %v449, %v912
    %v932 = vmul.f32 %v452, %v912
    %v933 = vmul.f32 %v457, %v912
    %v934 = vmul.f32 %v460, %v912
    %v935 = vmul.f32 %v465, %v912
    %v936 = vmul.f32 %v468, %v912
    %v937 = vmul.f32 %v473, %v912
    %v938 = vmul.f32 %v476, %v912
    %v939 = vmul.f32 %v481, %v912
    %v940 = vmul.f32 %v484, %v912
    %v941 = vmul.f32 %v489, %v912
    %v942 = vmul.f32 %v492, %v912
    %v943 = vmul.f32 %v497, %v912
    %v944 = vmul.f32 %v500, %v912
    %v945 = vmul.f32 %v505, %v912
    %v946 = vmul.f32 %v508, %v912
    %v947 = vmul.f32 %v513, %v912
    %v948 = vmul.f32 %v516, %v912
    %v949 = vmul.f32 %v521, %v912
    %v950 = vmul.f32 %v524, %v912
    %v951 = vmul.f32 %v529, %v912
    %v952 = vmul.f32 %v532, %v912
    %v953 = vmul.f32 %v537, %v912
    %v954 = vmul.f32 %v540, %v912
    %v955 = vmul.f32 %v545, %v912
    %v956 = vmul.f32 %v548, %v912
    %v957 = vmul.f32 %v553, %v912
    %v958 = vmul.f32 %v556, %v912
    %v959 = vmul.f32 %v561, %v912
    %v960 = vmul.f32 %v564, %v912
    %v961 = vmul.f32 %v569, %v912
    %v962 = vmul.f32 %v572, %v912
    %v963 = vmul.f32 %v577, %v912
    %v964 = vmul.f32 %v580, %v912
    %v965 = vmul.f32 %v585, %v912
    %v966 = vmul.f32 %v588, %v912
    %v967 = vmul.f32 %v593, %v912
    %v968 = vmul.f32 %v596, %v912
    %v969 = vmul.f32 %v601, %v912
    %v970 = vmul.f32 %v604, %v912
    %v971 = vmul.f32 %v609, %v912
    %v972 = vmul.f32 %v612, %v912
    %v973 = vmul.f32 %v617, %v912
    %v974 = vmul.f32 %v620, %v912
    %v975 = vmul.f32 %v625, %v912
    %v976 = vmul.f32 %v628, %v912
    %v977 = vlaneseq
    %v978 = vshrl.u32 %v977, 7
    %v979 = vsub.s32 1, %v978
    %v980 = vrot.slane %v908, %v979
    %v981 = vadd.f32 %v913, %v980
    %v982 = vadd.f32 %v914, %v980
    %v983 = vadd.f32 %v915, %v980
    %v984 = vadd.f32 %v916, %v980
    %v985 = vadd.f32 %v917, %v980
    %v986 = vadd.f32 %v918, %v980
    %v987 = vadd.f32 %v919, %v980
    %v988 = vadd.f32 %v920, %v980
    %v989 = vadd.f32 %v921, %v980
    %v990 = vadd.f32 %v922, %v980
    %v991 = vadd.f32 %v923, %v980
    %v992 = vadd.f32 %v924, %v980
    %v993 = vadd.f32 %v925, %v980
    %v994 = vadd.f32 %v926, %v980
    %v995 = vadd.f32 %v927, %v980
    %v996 = vadd.f32 %v928, %v980
    %v997 = vadd.f32 %v929, %v980
    %v998 = vadd.f32 %v930, %v980
    %v999 = vadd.f32 %v931, %v980
    %v1000 = vadd.f32 %v932, %v980
    %v1001 = vadd.f32 %v933, %v980
    %v1002 = vadd.f32 %v934, %v980
    %v1003 = vadd.f32 %v935, %v980
    %v1004 = vadd.f32 %v936, %v980
    %v1005 = vadd.f32 %v937, %v980
    %v1006 = vadd.f32 %v938, %v980
    %v1007 = vadd.f32 %v939, %v980
    %v1008 = vadd.f32 %v940, %v980
    %v1009 = vadd.f32 %v941, %v980
    %v1010 = vadd.f32 %v942, %v980
    %v1011 = vadd.f32 %v943, %v980
    %v1012 = vadd.f32 %v944, %v980
    %v1013 = vadd.f32 %v945, %v980
    %v1014 = vadd.f32 %v946, %v980
    %v1015 = vadd.f32 %v947, %v980
    %v1016 = vadd.f32 %v948, %v980
    %v1017 = vadd.f32 %v949, %v980
    %v1018 = vadd.f32 %v950, %v980
    %v1019 = vadd.f32 %v951, %v980
    %v1020 = vadd.f32 %v952, %v980
    %v1021 = vadd.f32 %v953, %v980
    %v1022 = vadd.f32 %v954, %v980
    %v1023 = vadd.f32 %v955, %v980
    %v1024 = vadd.f32 %v956, %v980
    %v1025 = vadd.f32 %v957, %v980
    %v1026 = vadd.f32 %v958, %v980
    %v1027 = vadd.f32 %v959, %v980
    %v1028 = vadd.f32 %v960, %v980
    %v1029 = vadd.f32 %v961, %v980
    %v1030 = vadd.f32 %v962, %v980
    %v1031 = vadd.f32 %v963, %v980
    %v1032 = vadd.f32 %v964, %v980
    %v1033 = vadd.f32 %v965, %v980
    %v1034 = vadd.f32 %v966, %v980
    %v1035 = vadd.f32 %v967, %v980
    %v1036 = vadd.f32 %v968, %v980
    %v1037 = vadd.f32 %v969, %v980
    %v1038 = vadd.f32 %v970, %v980
    %v1039 = vadd.f32 %v971, %v980
    %v1040 = vadd.f32 %v972, %v980
    %v1041 = vadd.f32 %v973, %v980
    %v1042 = vadd.f32 %v974, %v980
    %v1043 = vadd.f32 %v975, %v980
    %v1044 = vadd.f32 %v976, %v980
    %v1045 = vmax.f32 %v981, 0.0
    %v1046 = vmax.f32 %v982, 0.0
    %v1047 = vmax.f32 %v983, 0.0
    %v1048 = vmax.f32 %v984, 0.0
    %v1049 = vmax.f32 %v985, 0.0
    %v1050 = vmax.f32 %v986, 0.0
    %v1051 = vmax.f32 %v987, 0.0
    %v1052 = vmax.f32 %v988, 0.0
    %v1053 = vmax.f32 %v989, 0.0
    %v1054 = vmax.f32 %v990, 0.0
    %v1055 = vmax.f32 %v991, 0.0
    %v1056 = vmax.f32 %v992, 0.0
    %v1057 = vmax.f32 %v993, 0.0
    %v1058 = vmax.f32 %v994, 0.0
    %v1059 = vmax.f32 %v995, 0.0
    %v1060 = vmax.f32 %v996, 0.0
    %v1061 = vmax.f32 %v997, 0.0
    %v1062 = vmax.f32 %v998, 0.0
    %v1063 = vmax.f32 %v999, 0.0
    %v1064 = vmax.f32 %v1000, 0.0
    %v1065 = vmax.f32 %v1001, 0.0
    %v1066 = vmax.f32 %v1002, 0.0
    %v1067 = vmax.f32 %v1003, 0.0
    %v1068 = vmax.f32 %v1004, 0.0
    %v1069 = vmax.f32 %v1005, 0.0
    %v1070 = vmax.f32 %v1006, 0.0
    %v1071 = vmax.f32 %v1007, 0.0
    %v1072 = vmax.f32 %v1008, 0.0
    %v1073 = vmax.f32 %v1009, 0.0
    %v1074 = vmax.f32 %v1010, 0.0
    %v1075 = vmax.f32 %v1011, 0.0
    %v1076 = vmax.f32 %v1012, 0.0
    %v1077 = vmax.f32 %v1013, 0.0
    %v1078 = vmax.f32 %v1014, 0.0
    %v1079 = vmax.f32 %v1015, 0.0
    %v1080 = vmax.f32 %v1016, 0.0
    %v1081 = vmax.f32 %v1017, 0.0
    %v1082 = vmax.f32 %v1018, 0.0
    %v1083 = vmax.f32 %v1019, 0.0
    %v1084 = vmax.f32 %v1020, 0.0
    %v1085 = vmax.f32 %v1021, 0.0
    %v1086 = vmax.f32 %v1022, 0.0
    %v1087 = vmax.f32 %v1023, 0.0
    %v1088 = vmax.f32 %v1024, 0.0
    %v1089 = vmax.f32 %v1025, 0.0
    %v1090 = vmax.f32 %v1026, 0.0
    %v1091 = vmax.f32 %v1027, 0.0
    %v1092 = vmax.f32 %v1028, 0.0
    %v1093 = vmax.f32 %v1029, 0.0
    %v1094 = vmax.f32 %v1030, 0.0
    %v1095 = vmax.f32 %v1031, 0.0
    %v1096 = vmax.f32 %v1032, 0.0
    %v1097 = vmax.f32 %v1033, 0.0
    %v1098 = vmax.f32 %v1034, 0.0
    %v1099 = vmax.f32 %v1035, 0.0
    %v1100 = vmax.f32 %v1036, 0.0
    %v1101 = vmax.f32 %v1037, 0.0
    %v1102 = vmax.f32 %v1038, 0.0
    %v1103 = vmax.f32 %v1039, 0.0
    %v1104 = vmax.f32 %v1040, 0.0
    %v1105 = vmax.f32 %v1041, 0.0
    %v1106 = vmax.f32 %v1042, 0.0
    %v1107 = vmax.f32 %v1043, 0.0
    %v1108 = vmax.f32 %v1044, 0.0
    %v1109 = vlaneseq
    %v1110 = vand.u32 %v1109, 127
    %vm1111 = vcmp.lt.s32.totalorder %v1110, 64
    %v1112 = vsel %vm1111, 1, 0
    %vm1113 = vcmp.eq.s32.totalorder %v1112, 1
    %v1114 = vsel %vm1113, %v1045, %v377
    %v1115 = vsel %vm1113, %v1046, %v380
    %v1116 = vsel %vm1113, %v1047, %v385
    %v1117 = vsel %vm1113, %v1048, %v388
    %v1118 = vsel %vm1113, %v1049, %v393
    %v1119 = vsel %vm1113, %v1050, %v396
    %v1120 = vsel %vm1113, %v1051, %v401
    %v1121 = vsel %vm1113, %v1052, %v404
    %v1122 = vsel %vm1113, %v1053, %v409
    %v1123 = vsel %vm1113, %v1054, %v412
    %v1124 = vsel %vm1113, %v1055, %v417
    %v1125 = vsel %vm1113, %v1056, %v420
    %v1126 = vsel %vm1113, %v1057, %v425
    %v1127 = vsel %vm1113, %v1058, %v428
    %v1128 = vsel %vm1113, %v1059, %v433
    %v1129 = vsel %vm1113, %v1060, %v436
    %v1130 = vsel %vm1113, %v1061, %v441
    %v1131 = vsel %vm1113, %v1062, %v444
    %v1132 = vsel %vm1113, %v1063, %v449
    %v1133 = vsel %vm1113, %v1064, %v452
    %v1134 = vsel %vm1113, %v1065, %v457
    %v1135 = vsel %vm1113, %v1066, %v460
    %v1136 = vsel %vm1113, %v1067, %v465
    %v1137 = vsel %vm1113, %v1068, %v468
    %v1138 = vsel %vm1113, %v1069, %v473
    %v1139 = vsel %vm1113, %v1070, %v476
    %v1140 = vsel %vm1113, %v1071, %v481
    %v1141 = vsel %vm1113, %v1072, %v484
    %v1142 = vsel %vm1113, %v1073, %v489
    %v1143 = vsel %vm1113, %v1074, %v492
    %v1144 = vsel %vm1113, %v1075, %v497
    %v1145 = vsel %vm1113, %v1076, %v500
    %v1146 = vsel %vm1113, %v1077, %v505
    %v1147 = vsel %vm1113, %v1078, %v508
    %v1148 = vsel %vm1113, %v1079, %v513
    %v1149 = vsel %vm1113, %v1080, %v516
    %v1150 = vsel %vm1113, %v1081, %v521
    %v1151 = vsel %vm1113, %v1082, %v524
    %v1152 = vsel %vm1113, %v1083, %v529
    %v1153 = vsel %vm1113, %v1084, %v532
    %v1154 = vsel %vm1113, %v1085, %v537
    %v1155 = vsel %vm1113, %v1086, %v540
    %v1156 = vsel %vm1113, %v1087, %v545
    %v1157 = vsel %vm1113, %v1088, %v548
    %v1158 = vsel %vm1113, %v1089, %v553
    %v1159 = vsel %vm1113, %v1090, %v556
    %v1160 = vsel %vm1113, %v1091, %v561
    %v1161 = vsel %vm1113, %v1092, %v564
    %v1162 = vsel %vm1113, %v1093, %v569
    %v1163 = vsel %vm1113, %v1094, %v572
    %v1164 = vsel %vm1113, %v1095, %v577
    %v1165 = vsel %vm1113, %v1096, %v580
    %v1166 = vsel %vm1113, %v1097, %v585
    %v1167 = vsel %vm1113, %v1098, %v588
    %v1168 = vsel %vm1113, %v1099, %v593
    %v1169 = vsel %vm1113, %v1100, %v596
    %v1170 = vsel %vm1113, %v1101, %v601
    %v1171 = vsel %vm1113, %v1102, %v604
    %v1172 = vsel %vm1113, %v1103, %v609
    %v1173 = vsel %vm1113, %v1104, %v612
    %v1174 = vsel %vm1113, %v1105, %v617
    %v1175 = vsel %vm1113, %v1106, %v620
    %v1176 = vsel %vm1113, %v1107, %v625
    %v1177 = vsel %vm1113, %v1108, %v628
    %v1178 = vpack.c.bf16 %v1115, %v1114
    %v1179 = vpack.c.bf16 %v1117, %v1116
    %v1180 = vpack.c.bf16 %v1119, %v1118
    %v1181 = vpack.c.bf16 %v1121, %v1120
    %v1182 = vpack.c.bf16 %v1123, %v1122
    %v1183 = vpack.c.bf16 %v1125, %v1124
    %v1184 = vpack.c.bf16 %v1127, %v1126
    %v1185 = vpack.c.bf16 %v1129, %v1128
    %v1186 = vpack.c.bf16 %v1131, %v1130
    %v1187 = vpack.c.bf16 %v1133, %v1132
    %v1188 = vpack.c.bf16 %v1135, %v1134
    %v1189 = vpack.c.bf16 %v1137, %v1136
    %v1190 = vpack.c.bf16 %v1139, %v1138
    %v1191 = vpack.c.bf16 %v1141, %v1140
    %v1192 = vpack.c.bf16 %v1143, %v1142
    %v1193 = vpack.c.bf16 %v1145, %v1144
    %v1194 = vpack.c.bf16 %v1147, %v1146
    %v1195 = vpack.c.bf16 %v1149, %v1148
    %v1196 = vpack.c.bf16 %v1151, %v1150
    %v1197 = vpack.c.bf16 %v1153, %v1152
    %v1198 = vpack.c.bf16 %v1155, %v1154
    %v1199 = vpack.c.bf16 %v1157, %v1156
    %v1200 = vpack.c.bf16 %v1159, %v1158
    %v1201 = vpack.c.bf16 %v1161, %v1160
    %v1202 = vpack.c.bf16 %v1163, %v1162
    %v1203 = vpack.c.bf16 %v1165, %v1164
    %v1204 = vpack.c.bf16 %v1167, %v1166
    %v1205 = vpack.c.bf16 %v1169, %v1168
    %v1206 = vpack.c.bf16 %v1171, %v1170
    %v1207 = vpack.c.bf16 %v1173, %v1172
    %v1208 = vpack.c.bf16 %v1175, %v1174
    %v1209 = vpack.c.bf16 %v1177, %v1176
    %v1242 = vunpack.c.l.b16 %v1178
    %v1243 = vunpack.c.h.b16 %v1178
    %v1244 = vunpack.c.l.b16 %v1179
    %v1245 = vunpack.c.h.b16 %v1179
    %v1246 = vunpack.c.l.b16 %v1180
    %v1247 = vunpack.c.h.b16 %v1180
    %v1248 = vunpack.c.l.b16 %v1181
    %v1249 = vunpack.c.h.b16 %v1181
    %v1250 = vunpack.c.l.b16 %v1182
    %v1251 = vunpack.c.h.b16 %v1182
    %v1252 = vunpack.c.l.b16 %v1183
    %v1253 = vunpack.c.h.b16 %v1183
    %v1254 = vunpack.c.l.b16 %v1184
    %v1255 = vunpack.c.h.b16 %v1184
    %v1256 = vunpack.c.l.b16 %v1185
    %v1257 = vunpack.c.h.b16 %v1185
    %v1258 = vunpack.c.l.b16 %v1186
    %v1259 = vunpack.c.h.b16 %v1186
    %v1260 = vunpack.c.l.b16 %v1187
    %v1261 = vunpack.c.h.b16 %v1187
    %v1262 = vunpack.c.l.b16 %v1188
    %v1263 = vunpack.c.h.b16 %v1188
    %v1264 = vunpack.c.l.b16 %v1189
    %v1265 = vunpack.c.h.b16 %v1189
    %v1266 = vunpack.c.l.b16 %v1190
    %v1267 = vunpack.c.h.b16 %v1190
    %v1268 = vunpack.c.l.b16 %v1191
    %v1269 = vunpack.c.h.b16 %v1191
    %v1270 = vunpack.c.l.b16 %v1192
    %v1271 = vunpack.c.h.b16 %v1192
    %v1272 = vunpack.c.l.b16 %v1193
    %v1273 = vunpack.c.h.b16 %v1193
    %v1274 = vunpack.c.l.b16 %v1194
    %v1275 = vunpack.c.h.b16 %v1194
    %v1276 = vunpack.c.l.b16 %v1195
    %v1277 = vunpack.c.h.b16 %v1195
    %v1278 = vunpack.c.l.b16 %v1196
    %v1279 = vunpack.c.h.b16 %v1196
    %v1280 = vunpack.c.l.b16 %v1197
    %v1281 = vunpack.c.h.b16 %v1197
    %v1282 = vunpack.c.l.b16 %v1198
    %v1283 = vunpack.c.h.b16 %v1198
    %v1284 = vunpack.c.l.b16 %v1199
    %v1285 = vunpack.c.h.b16 %v1199
    %v1286 = vunpack.c.l.b16 %v1200
    %v1287 = vunpack.c.h.b16 %v1200
    %v1288 = vunpack.c.l.b16 %v1201
    %v1289 = vunpack.c.h.b16 %v1201
    %v1290 = vunpack.c.l.b16 %v1202
    %v1291 = vunpack.c.h.b16 %v1202
    %v1292 = vunpack.c.l.b16 %v1203
    %v1293 = vunpack.c.h.b16 %v1203
    %v1294 = vunpack.c.l.b16 %v1204
    %v1295 = vunpack.c.h.b16 %v1204
    %v1296 = vunpack.c.l.b16 %v1205
    %v1297 = vunpack.c.h.b16 %v1205
    %v1298 = vunpack.c.l.b16 %v1206
    %v1299 = vunpack.c.h.b16 %v1206
    %v1300 = vunpack.c.l.b16 %v1207
    %v1301 = vunpack.c.h.b16 %v1207
    %v1302 = vunpack.c.l.b16 %v1208
    %v1303 = vunpack.c.h.b16 %v1208
    %v1304 = vunpack.c.l.b16 %v1209
    %v1305 = vunpack.c.h.b16 %v1209
    %v1306 = vpack.c.b16 %v1242, %v1242
    %v1307 = vpack.c.b16 %v1243, %v1243
    %v1308 = vpack.c.b16 %v1244, %v1244
    %v1309 = vpack.c.b16 %v1245, %v1245
    %v1310 = vpack.c.b16 %v1246, %v1246
    %v1311 = vpack.c.b16 %v1247, %v1247
    %v1312 = vpack.c.b16 %v1248, %v1248
    %v1313 = vpack.c.b16 %v1249, %v1249
    %v1314 = vpack.c.b16 %v1250, %v1250
    %v1315 = vpack.c.b16 %v1251, %v1251
    %v1316 = vpack.c.b16 %v1252, %v1252
    %v1317 = vpack.c.b16 %v1253, %v1253
    %v1318 = vpack.c.b16 %v1254, %v1254
    %v1319 = vpack.c.b16 %v1255, %v1255
    %v1320 = vpack.c.b16 %v1256, %v1256
    %v1321 = vpack.c.b16 %v1257, %v1257
    %v1322 = vpack.c.b16 %v1258, %v1258
    %v1323 = vpack.c.b16 %v1259, %v1259
    %v1324 = vpack.c.b16 %v1260, %v1260
    %v1325 = vpack.c.b16 %v1261, %v1261
    %v1326 = vpack.c.b16 %v1262, %v1262
    %v1327 = vpack.c.b16 %v1263, %v1263
    %v1328 = vpack.c.b16 %v1264, %v1264
    %v1329 = vpack.c.b16 %v1265, %v1265
    %v1330 = vpack.c.b16 %v1266, %v1266
    %v1331 = vpack.c.b16 %v1267, %v1267
    %v1332 = vpack.c.b16 %v1268, %v1268
    %v1333 = vpack.c.b16 %v1269, %v1269
    %v1334 = vpack.c.b16 %v1270, %v1270
    %v1335 = vpack.c.b16 %v1271, %v1271
    %v1336 = vpack.c.b16 %v1272, %v1272
    %v1337 = vpack.c.b16 %v1273, %v1273
    %v1338 = vpack.c.b16 %v1274, %v1274
    %v1339 = vpack.c.b16 %v1275, %v1275
    %v1340 = vpack.c.b16 %v1276, %v1276
    %v1341 = vpack.c.b16 %v1277, %v1277
    %v1342 = vpack.c.b16 %v1278, %v1278
    %v1343 = vpack.c.b16 %v1279, %v1279
    %v1344 = vpack.c.b16 %v1280, %v1280
    %v1345 = vpack.c.b16 %v1281, %v1281
    %v1346 = vpack.c.b16 %v1282, %v1282
    %v1347 = vpack.c.b16 %v1283, %v1283
    %v1348 = vpack.c.b16 %v1284, %v1284
    %v1349 = vpack.c.b16 %v1285, %v1285
    %v1350 = vpack.c.b16 %v1286, %v1286
    %v1351 = vpack.c.b16 %v1287, %v1287
    %v1352 = vpack.c.b16 %v1288, %v1288
    %v1353 = vpack.c.b16 %v1289, %v1289
    %v1354 = vpack.c.b16 %v1290, %v1290
    %v1355 = vpack.c.b16 %v1291, %v1291
    %v1356 = vpack.c.b16 %v1292, %v1292
    %v1357 = vpack.c.b16 %v1293, %v1293
    %v1358 = vpack.c.b16 %v1294, %v1294
    %v1359 = vpack.c.b16 %v1295, %v1295
    %v1360 = vpack.c.b16 %v1296, %v1296
    %v1361 = vpack.c.b16 %v1297, %v1297
    %v1362 = vpack.c.b16 %v1298, %v1298
    %v1363 = vpack.c.b16 %v1299, %v1299
    %v1364 = vpack.c.b16 %v1300, %v1300
    %v1365 = vpack.c.b16 %v1301, %v1301
    %v1366 = vpack.c.b16 %v1302, %v1302
    %v1367 = vpack.c.b16 %v1303, %v1303
    %v1368 = vpack.c.b16 %v1304, %v1304
    %v1369 = vpack.c.b16 %v1305, %v1305
    %1434 = vst [vmem:[#allocation2] sm:$0xf] %v1306
    %1435 = vst [vmem:[#allocation2 + $0x4] sm:$0xf] %v1307
    %1436 = vst [vmem:[#allocation2 + $0x8] sm:$0xf] %v1308
    %1437 = vst [vmem:[#allocation2 + $0xc] sm:$0xf] %v1309
    %1438 = vst [vmem:[#allocation2 + $0x10] sm:$0xf] %v1310
    %1439 = vst [vmem:[#allocation2 + $0x14] sm:$0xf] %v1311
    %1440 = vst [vmem:[#allocation2 + $0x18] sm:$0xf] %v1312
    %1441 = vst [vmem:[#allocation2 + $0x1c] sm:$0xf] %v1313
    %1442 = vst [vmem:[#allocation2 + $0x20] sm:$0xf] %v1314
    %1443 = vst [vmem:[#allocation2 + $0x24] sm:$0xf] %v1315
    %1444 = vst [vmem:[#allocation2 + $0x28] sm:$0xf] %v1316
    %1445 = vst [vmem:[#allocation2 + $0x2c] sm:$0xf] %v1317
    %1446 = vst [vmem:[#allocation2 + $0x30] sm:$0xf] %v1318
    %1447 = vst [vmem:[#allocation2 + $0x34] sm:$0xf] %v1319
    %1448 = vst [vmem:[#allocation2 + $0x38] sm:$0xf] %v1320
    %1449 = vst [vmem:[#allocation2 + $0x3c] sm:$0xf] %v1321
    %1450 = vst [vmem:[#allocation2 + $0x40] sm:$0xf] %v1322
    %1451 = vst [vmem:[#allocation2 + $0x44] sm:$0xf] %v1323
    %1452 = vst [vmem:[#allocation2 + $0x48] sm:$0xf] %v1324
    %1453 = vst [vmem:[#allocation2 + $0x4c] sm:$0xf] %v1325
    %1454 = vst [vmem:[#allocation2 + $0x50] sm:$0xf] %v1326
    %1455 = vst [vmem:[#allocation2 + $0x54] sm:$0xf] %v1327
    %1456 = vst [vmem:[#allocation2 + $0x58] sm:$0xf] %v1328
    %1457 = vst [vmem:[#allocation2 + $0x5c] sm:$0xf] %v1329
    %1458 = vst [vmem:[#allocation2 + $0x60] sm:$0xf] %v1330
    %1459 = vst [vmem:[#allocation2 + $0x64] sm:$0xf] %v1331
    %1460 = vst [vmem:[#allocation2 + $0x68] sm:$0xf] %v1332
    %1461 = vst [vmem:[#allocation2 + $0x6c] sm:$0xf] %v1333
    %1462 = vst [vmem:[#allocation2 + $0x70] sm:$0xf] %v1334
    %1463 = vst [vmem:[#allocation2 + $0x74] sm:$0xf] %v1335
    %1464 = vst [vmem:[#allocation2 + $0x78] sm:$0xf] %v1336
    %1465 = vst [vmem:[#allocation2 + $0x7c] sm:$0xf] %v1337
    %1466 = vst [vmem:[#allocation2 + $0x80] sm:$0xf] %v1338
    %1467 = vst [vmem:[#allocation2 + $0x84] sm:$0xf] %v1339
    %1468 = vst [vmem:[#allocation2 + $0x88] sm:$0xf] %v1340
    %1469 = vst [vmem:[#allocation2 + $0x8c] sm:$0xf] %v1341
    %1470 = vst [vmem:[#allocation2 + $0x90] sm:$0xf] %v1342
    %1471 = vst [vmem:[#allocation2 + $0x94] sm:$0xf] %v1343
    %1472 = vst [vmem:[#allocation2 + $0x98] sm:$0xf] %v1344
    %1473 = vst [vmem:[#allocation2 + $0x9c] sm:$0xf] %v1345
    %1474 = vst [vmem:[#allocation2 + $0xa0] sm:$0xf] %v1346
    %1475 = vst [vmem:[#allocation2 + $0xa4] sm:$0xf] %v1347
    %1476 = vst [vmem:[#allocation2 + $0xa8] sm:$0xf] %v1348
    %1477 = vst [vmem:[#allocation2 + $0xac] sm:$0xf] %v1349
    %1478 = vst [vmem:[#allocation2 + $0xb0] sm:$0xf] %v1350
    %1479 = vst [vmem:[#allocation2 + $0xb4] sm:$0xf] %v1351
    %1480 = vst [vmem:[#allocation2 + $0xb8] sm:$0xf] %v1352
    %1481 = vst [vmem:[#allocation2 + $0xbc] sm:$0xf] %v1353
    %1482 = vst [vmem:[#allocation2 + $0xc0] sm:$0xf] %v1354
    %1483 = vst [vmem:[#allocation2 + $0xc4] sm:$0xf] %v1355
    %1484 = vst [vmem:[#allocation2 + $0xc8] sm:$0xf] %v1356
    %1485 = vst [vmem:[#allocation2 + $0xcc] sm:$0xf] %v1357
    %1486 = vst [vmem:[#allocation2 + $0xd0] sm:$0xf] %v1358
    %1487 = vst [vmem:[#allocation2 + $0xd4] sm:$0xf] %v1359
    %1488 = vst [vmem:[#allocation2 + $0xd8] sm:$0xf] %v1360
    %1489 = vst [vmem:[#allocation2 + $0xdc] sm:$0xf] %v1361
    %1490 = vst [vmem:[#allocation2 + $0xe0] sm:$0xf] %v1362
    %1491 = vst [vmem:[#allocation2 + $0xe4] sm:$0xf] %v1363
    %1492 = vst [vmem:[#allocation2 + $0xe8] sm:$0xf] %v1364
    %1493 = vst [vmem:[#allocation2 + $0xec] sm:$0xf] %v1365
    %1494 = vst [vmem:[#allocation2 + $0xf0] sm:$0xf] %v1366
    %1495 = vst [vmem:[#allocation2 + $0xf4] sm:$0xf] %v1367
    %1496 = vst [vmem:[#allocation2 + $0xf8] sm:$0xf] %v1368
    %1497 = vst [vmem:[#allocation2 + $0xfc] sm:$0xf] %v1369
    // Predicated region
    $region14: #{tpu_custom_call.1} parent=1 // pred_check
      _
    $region15: #{tpu_custom_call.1} parent=1 // pred_check_branch
      %1499 = sbr.rel (0) target = $region17
    $region16: #{tpu_custom_call.1} parent=1 // pred_region
      %s1501 = ssub.s32 4096, 4096
      %1502 = vsyncadd [#allocation3], %s1501
      %s1503 = sshll.u32 [#allocation2], 4
      %s1504 = int_to_ptr.vmem [resolvable:$true] %s1503
      %1509 = dma.vmem_to_hbm [thread:$0]  %s1504, 4096, %s3, [#allocation3], 64, 64, 4
    $region17: #{tpu_custom_call.1} parent=1 // pred_fallthru
      _
    // Predicated region
    $region18: #{tpu_custom_call.1} parent=1 // pred_check
      _
    $region19: #{tpu_custom_call.1} parent=1 // pred_check_branch
      %1511 = sbr.rel (0) target = $region21
    $region20: #{tpu_custom_call.1} parent=1 // pred_region
      %1512 = dma.done [#allocation3], 4096
    $region21: #{tpu_custom_call.1} parent=1 // pred_fallthru
      _
    %1513 = vsyncpa [#allocation3], 1

</llo_original>
